<compile_context>
chip_gen: v7x
topology: tpu7x:2x2x1
jax: 0.10.0
libtpu: 0.0.40
codegen_flags: <defaults>
</compile_context>

<pallas_src>
import jax
import jax.numpy as jnp
from jax.experimental import pallas as pl
from jax.experimental.pallas import tpu as pltpu


def joint_kernel(x_ref, y_ref, w_ref, b_ref, o_ref):
    """One (v-tile, b, t-tile, u-tile) grid step.

    x_ref: (1, Tt, D)        y_ref: (1, Ut, D)
    w_ref: (D, Vt) bf16      b_ref: (1, Vt) f32
    o_ref: (1, Tt, Ut, Vt)
    """
    x = x_ref[0]                                      # (Tt, D)
    y = y_ref[0]                                      # (Ut, D)
    tt, d = x.shape
    ut = y.shape[0]

    # Broadcast Hadamard product on the VPU.  On v6e/v7x the wrapper feeds
    # bf16 inputs (bf16-native VALU, half the vreg pressure); on v5e inputs
    # stay f32 and a single cast feeds the MXU (astype is then a no-op when
    # already bf16).
    z = (x[:, None, :] * y[None, :, :]).astype(w_ref.dtype)   # (Tt, Ut, D)
    z2 = z.reshape(tt * ut, d)                                # (Tt*Ut, D)

    # MXU matmul in the natural (M,K)x(K,N) layout, f32 accumulation.
    out = jnp.dot(z2, w_ref[...], preferred_element_type=jnp.float32)
    out = out + b_ref[...]                                    # (Tt*Ut, Vt) + (1, Vt)

    o_ref[0] = out.reshape(tt, ut, -1).astype(o_ref.dtype)


def _pad_axis(a, axis, multiple):
    n = a.shape[axis]
    pad = (-n) % multiple
    if pad == 0:
        return a
    widths = [(0, 0)] * a.ndim
    widths[axis] = (0, pad)
    return jnp.pad(a, widths)


def _aligned_tile(n, cap, align):
    """Largest multiple of `align` dividing n and <= cap (n % align == 0)."""
    cap = min(cap, n)
    best = align
    d = align
    while d <= cap:
        if n % d == 0:
            best = d
        d += align
    return best


def _chip_flags():
    """(has bf16 VPU, VMEM capacity bytes) with conservative fallbacks."""
    kind = ""
    vmem_cap = 64 << 20          # conservative default (v7x per-core VMEM)
    try:
        kind = jax.devices()[0].device_kind.lower()
    except Exception:
        pass
    try:
        vmem_cap = int(pltpu.get_tpu_info().vmem_capacity_bytes)
    except Exception:
        pass
    bf16_vpu = any(s in kind for s in ("v6", "v7", "7x"))
    return bf16_vpu, vmem_cap


def joint_network(x, y, weight, bias, out_dtype=None):
    """x: (B, T, D), y: (B, U, D), weight: (V, D), bias: (V,) -> (B, T, U, V)."""
    B, T, D = x.shape
    _, U, _ = y.shape
    V = weight.shape[0]
    out_dtype = out_dtype or x.dtype

    bf16_vpu, vmem_cap = _chip_flags()

    # Wrapper-side padding: T/U to x8 (sublane), V to x128 (lane) so tiles are
    # always aligned (no masked vst / relayout fallback on any generation).
    x_p = _pad_axis(x, 1, 8)
    y_p = _pad_axis(y, 1, 8)
    w_t = _pad_axis(weight.T.astype(jnp.bfloat16), 1, 128)          # (D, Vp)
    b2 = _pad_axis(bias.reshape(1, V).astype(jnp.float32), 1, 128)  # (1, Vp)
    Tp, Up, Vp = x_p.shape[1], y_p.shape[1], w_t.shape[1]

    # bf16 Hadamard inputs on bf16-VPU chips (v6e/v7x); keep f32 on v5e.
    in_dtype = jnp.bfloat16 if bf16_vpu else x.dtype
    x_p = x_p.astype(in_dtype)
    y_p = y_p.astype(in_dtype)
    x_item = jnp.dtype(in_dtype).itemsize
    out_item = jnp.dtype(out_dtype).itemsize

    # Generation-specific tile caps / VMEM ceiling.
    if vmem_cap >= (100 << 20):           # v5e / v6e: 128 MiB VMEM
        t_cap, u_cap, v_cap = 128, 32, 1024
        ceiling = 64 << 20
    else:                                 # v7x: 64 MiB per-TC VMEM
        t_cap, u_cap, v_cap = 64, 16, 512
        ceiling = 40 << 20

    t_tile = _aligned_tile(Tp, t_cap, 8)
    u_tile = _aligned_tile(Up, u_cap, 8)
    v_tile = _aligned_tile(Vp, v_cap, 128)

    def vmem_need(t, u, v):
        # Double-buffered BlockSpec I/O tiles ...
        io = 2 * (t * u * v * out_item          # output tile
                  + t * D * x_item              # x tile
                  + u * D * x_item              # y tile
                  + D * v * 2                   # bf16 weight tile
                  + v * 4)                      # bias tile
        # ... plus in-kernel temporaries (single-buffered).
        tmp = (t * u * D * (x_item + 2)         # z Hadamard + bf16 MXU copy
               + t * u * v * 4)                 # f32 matmul result pre-store
        return io + tmp + (2 << 20)             # headroom

    while vmem_need(t_tile, u_tile, v_tile) > ceiling:
        if t_tile > 8:
            t_tile = _aligned_tile(Tp, t_tile // 2, 8)
        elif u_tile > 8:
            u_tile = _aligned_tile(Up, u_tile // 2, 8)
        elif v_tile > 128:
            v_tile = _aligned_tile(Vp, v_tile // 2, 128)
        else:
            break

    vmem_limit = int(min(max(vmem_need(t_tile, u_tile, v_tile), 16 << 20),
                         ceiling))

    # V-tile outermost -> weight/bias resident across the entire B/T/U sweep.
    grid = (Vp // v_tile, B, Tp // t_tile, Up // u_tile)

    n_v = Vp // v_tile
    flops = 2 * B * Tp * Up * D * Vp + B * Tp * Up * D
    bytes_accessed = (n_v * (x_p.size * x_item + y_p.size * x_item)
                      + w_t.size * 2 + b2.size * 4
                      + B * Tp * Up * Vp * out_item)

    out_p = pl.pallas_call(
        joint_kernel,
        out_shape=jax.ShapeDtypeStruct((B, Tp, Up, Vp), out_dtype),
        grid_spec=pltpu.PrefetchScalarGridSpec(
            num_scalar_prefetch=0,
            grid=grid,
            in_specs=[
                pl.BlockSpec((1, t_tile, D), lambda v, b, t, u: (b, t, 0)),
                pl.BlockSpec((1, u_tile, D), lambda v, b, t, u: (b, u, 0)),
                # Block index depends only on the slowest (V) grid axis ->
                # weight/bias stay in VMEM across all B/T/U steps (fetched
                # exactly once per V-tile).
                pl.BlockSpec((D, v_tile), lambda v, b, t, u: (0, v)),
                pl.BlockSpec((1, v_tile), lambda v, b, t, u: (0, v)),
            ],
            out_specs=pl.BlockSpec(
                (1, t_tile, u_tile, v_tile),
                lambda v, b, t, u: (b, t, u, v)),
        ),
        compiler_params=pltpu.CompilerParams(
            dimension_semantics=("parallel", "parallel", "parallel", "parallel"),
            vmem_limit_bytes=vmem_limit),
        cost_estimate=pl.CostEstimate(
            flops=int(flops), transcendentals=0,
            bytes_accessed=int(bytes_accessed)),
    )(x_p, y_p, w_t, b2)

    if (Tp, Up, Vp) != (T, U, V):
        out_p = out_p[:, :T, :U, :V]
    return out_p


if __name__ == "__main__":
    # Small shapes consistent with the module's forward.
    B, T, U, D, V = 2, 8, 8, 32, 128

    key = jax.random.PRNGKey(0)
    kx, ky, kw, kb = jax.random.split(key, 4)

    x = jax.random.normal(kx, (B, T, D), dtype=jnp.float32)
    y = jax.random.normal(ky, (B, U, D), dtype=jnp.float32)
    # Deterministic synthetic Linear(dim=D, vocab_size=V) parameters.
    weight = jax.random.normal(kw, (V, D), dtype=jnp.float32) * 0.05
    bias = jax.random.normal(kb, (V,), dtype=jnp.float32) * 0.05

    out = joint_network(x, y, weight, bias)
    out = jax.block_until_ready(out)

    # Pure-JAX f32 reference of the PyTorch semantics.  Kernel uses bf16 MXU
    # operands (and bf16 Hadamard on v6e/v7x) with f32 accumulation -> loosen
    # tolerance accordingly.
    z_ref = x[:, :, None, :] * y[:, None, :, :]              # (B, T, U, D)
    ref = jnp.einsum("btud,vd->btuv", z_ref, weight) + bias  # (B, T, U, V)
    assert out.shape == (B, T, U, V)
    max_err = float(jnp.max(jnp.abs(out.astype(jnp.float32) - ref)))
    assert jnp.allclose(out.astype(jnp.float32), ref, atol=2e-2, rtol=2e-2), max_err

    print("KERNEL_OK")
</pallas_src>

<mosaic_0001>
module attributes {stable_mosaic.version = 11 : i64} {
  func.func @joint_kernel(%arg0: i32, %arg1: i32, %arg2: i32, %arg3: i32, %arg4: memref<1x8x32xf32, #tpu.memory_space<vmem>>, %arg5: memref<1x8x32xf32, #tpu.memory_space<vmem>>, %arg6: memref<32x128xbf16, #tpu.memory_space<vmem>>, %arg7: memref<1x128xf32, #tpu.memory_space<vmem>>, %arg8: memref<1x8x8x128xf32, #tpu.memory_space<vmem>>) attributes {dimension_semantics = [#tpu.dimension_semantics<parallel>, #tpu.dimension_semantics<parallel>, #tpu.dimension_semantics<parallel>, #tpu.dimension_semantics<parallel>], iteration_bounds = array<i64: 1, 2, 1, 1>, scalar_prefetch = 0 : i64, scratch_operands = 0 : i64, tpu.core_type = #tpu.core_type<tc>, window_params = [{transform_indices = @transform_0, window_bounds = array<i64: 1, 8, 32>}, {transform_indices = @transform_1, window_bounds = array<i64: 1, 8, 32>}, {transform_indices = @transform_2, window_bounds = array<i64: 32, 128>}, {transform_indices = @transform_3, window_bounds = array<i64: 1, 128>}, {transform_indices = @transform_4, window_bounds = array<i64: 1, 8, 8, 128>}]} {
    %c0 = arith.constant 0 : index
    %c0_0 = arith.constant 0 : index
    %c0_1 = arith.constant 0 : index
    %0 = vector.load %arg4[%c0, %c0_0, %c0_1] : memref<1x8x32xf32, #tpu.memory_space<vmem>>, vector<1x8x32xf32>
    %1 = vector.shape_cast %0 : vector<1x8x32xf32> to vector<8x32xf32>
    %c0_2 = arith.constant 0 : index
    %c0_3 = arith.constant 0 : index
    %c0_4 = arith.constant 0 : index
    %2 = vector.load %arg5[%c0_2, %c0_3, %c0_4] : memref<1x8x32xf32, #tpu.memory_space<vmem>>, vector<1x8x32xf32>
    %3 = vector.shape_cast %2 : vector<1x8x32xf32> to vector<8x32xf32>
    %4 = vector.shape_cast %1 : vector<8x32xf32> to vector<8x1x32xf32>
    %5 = vector.shape_cast %3 : vector<8x32xf32> to vector<1x8x32xf32>
    %6 = vector.broadcast %4 : vector<8x1x32xf32> to vector<8x8x32xf32>
    %7 = vector.broadcast %5 : vector<1x8x32xf32> to vector<8x8x32xf32>
    %8 = arith.mulf %6, %7 : vector<8x8x32xf32>
    %9 = arith.truncf %8 : vector<8x8x32xf32> to vector<8x8x32xbf16>
    %10 = vector.shape_cast %9 : vector<8x8x32xbf16> to vector<64x32xbf16>
    %c0_5 = arith.constant 0 : index
    %c0_6 = arith.constant 0 : index
    %11 = vector.load %arg6[%c0_5, %c0_6] : memref<32x128xbf16, #tpu.memory_space<vmem>>, vector<32x128xbf16>
    %cst = arith.constant dense<0.000000e+00> : vector<64x128xf32>
    %12 = tpu.matmul %10, %11, %cst {dimension_numbers = #tpu.dot_dimension_numbers<[1], [0], [0], [1], [0, 0, 1, 1], [], []>} : vector<64x32xbf16>, vector<32x128xbf16>, vector<64x128xf32> -> vector<64x128xf32>
    %c0_7 = arith.constant 0 : index
    %c0_8 = arith.constant 0 : index
    %13 = vector.load %arg7[%c0_7, %c0_8] : memref<1x128xf32, #tpu.memory_space<vmem>>, vector<1x128xf32>
    %14 = vector.broadcast %13 : vector<1x128xf32> to vector<64x128xf32>
    %15 = arith.addf %12, %14 : vector<64x128xf32>
    %16 = vector.shape_cast %15 : vector<64x128xf32> to vector<8x8x128xf32>
    %c0_9 = arith.constant 0 : index
    %c0_10 = arith.constant 0 : index
    %c0_11 = arith.constant 0 : index
    %c0_12 = arith.constant 0 : index
    %17 = vector.load %arg8[%c0_9, %c0_10, %c0_11, %c0_12] : memref<1x8x8x128xf32, #tpu.memory_space<vmem>>, vector<1x8x8x128xf32>
    %18 = vector.shape_cast %17 : vector<1x8x8x128xf32> to vector<8x8x128xf32>
    %19 = vector.shape_cast %16 : vector<8x8x128xf32> to vector<1x8x8x128xf32>
    tpu.vector_store %arg8[%c0_9, %c0_10, %c0_11, %c0_12], %19 {strides = array<i32>} : memref<1x8x8x128xf32, #tpu.memory_space<vmem>>, vector<1x8x8x128xf32>,
    return
  }
  func.func @transform_0(%arg0: i32, %arg1: i32, %arg2: i32, %arg3: i32) -> (i32, i32, i32) {
    %c0_i32 = arith.constant 0 : i32
    %c0_i32_0 = arith.constant 0 : i32
    return %arg1, %arg2, %c0_i32 : i32, i32, i32
  }
  func.func @transform_1(%arg0: i32, %arg1: i32, %arg2: i32, %arg3: i32) -> (i32, i32, i32) {
    %c0_i32 = arith.constant 0 : i32
    %c0_i32_0 = arith.constant 0 : i32
    return %arg1, %arg3, %c0_i32 : i32, i32, i32
  }
  func.func @transform_2(%arg0: i32, %arg1: i32, %arg2: i32, %arg3: i32) -> (i32, i32) {
    %c0_i32 = arith.constant 0 : i32
    %c0_i32_0 = arith.constant 0 : i32
    return %c0_i32, %arg0 : i32, i32
  }
  func.func @transform_3(%arg0: i32, %arg1: i32, %arg2: i32, %arg3: i32) -> (i32, i32) {
    %c0_i32 = arith.constant 0 : i32
    %c0_i32_0 = arith.constant 0 : i32
    return %c0_i32, %arg0 : i32, i32
  }
  func.func @transform_4(%arg0: i32, %arg1: i32, %arg2: i32, %arg3: i32) -> (i32, i32, i32, i32) {
    %c0_i32 = arith.constant 0 : i32
    return %arg1, %arg2, %arg3, %arg0 : i32, i32, i32, i32
  }
}

</mosaic_0001>

<llo_original>
// kernel: tpu_custom_call.1
$region0: #{tpu_custom_call.1}
  #allocation0 [shape = 'u32[]', space=smem, size = 0x4, offset = 0x4, fixed_abs, tag = 'smem constant byte address 0x4 - core index']
  #allocation1 [shape = 'u32[144,128]{1,0:T(1,128)}', space=vmem, size = 0x12000, scoped, tag = 'internal scratch']
  %s0 = inlined_call_operand.hbm [shape: f32[2,8,32], index: 0, kind: input, shape index: {}]
  %s1 = inlined_call_operand.hbm [shape: f32[2,8,32], index: 1, kind: input, shape index: {}]
  %s2 = inlined_call_operand.hbm [shape: bf16[32,128], index: 2, kind: input, shape index: {}]
  %s3 = inlined_call_operand.vmem [shape: f32[1,128], index: 3, kind: input, shape index: {}]
  %s4 = inlined_call_operand.hbm [shape: f32[2,8,8,128], index: 4, kind: output, shape index: {}]
  %s5 = sld [smem:[#allocation0]]
  $region61: #{tpu_custom_call.1} parent=0
    _
  %s7 = ssub.s32 1, %s5
  %s8 = scalar_select 0, %s7, %s5
  $region1: #{tpu_custom_call.1} parent=0
    #allocation2 [shape = 'u8[8192]{0}', space=vmem, size = 0x2000, scoped, tag = 'input window, operand 0']
    #allocation3 [shape = 's32[2]{0}', space=sflag, size = 0x8, scoped, tag = 'scoped memory for tpu_custom_call.1']
    #allocation4 [shape = 's32[2]{0}', space=sflag, size = 0x8, scoped, tag = 'scoped memory for tpu_custom_call.1']
    #allocation5 [shape = 'u8[8192]{0}', space=vmem, size = 0x2000, scoped, tag = 'input window, operand 1']
    #allocation6 [shape = 's32[2]{0}', space=sflag, size = 0x8, scoped, tag = 'scoped memory for tpu_custom_call.1']
    #allocation7 [shape = 'u8[8192]{0}', space=vmem, size = 0x2000, scoped, tag = 'input window, operand 2, single buffered']
    #allocation8 [shape = 'u8[65536]{0}', space=vmem, size = 0x10000, scoped, tag = 'output window, operand 0']
    %9 = vsyncpa [#allocation3], 0
    %s10 = scalar_lea.sflag [#allocation3], 1
    %11 = vsyncpa %s10, 0
    %12 = vsyncpa [#allocation6], 0
    %s13 = scalar_lea.sflag [#allocation6], 1
    %14 = vsyncpa %s13, 0
    %15 = vsyncpa [#allocation4], 0
    %s16 = scalar_lea.sflag [#allocation4], 1
    %17 = vsyncpa %s16, 0
    loop: start=0, step=1, limit=4
    $region2: #{tpu_custom_call.1} parent=1 // loop_pre_header
      _
    $region3: #{tpu_custom_call.1} parent=1 // loop_header
      %s19 = sphi 0, %s23
      %p20 = scmp.ge.s32.totalorder %s19, 4
      %s26 = sphi 0, %s52
      %s27 = sphi 0, %s48
      %s28 = sphi 0, %s44
      %s29 = sphi 0, %s40
      %s30 = sphi 0, %s26
      %s31 = sphi 0, %s27
      %s32 = sphi 0, %s28
      %s33 = sphi 0, %s29
      %s34 = sphi 0, %s30
      %s35 = sphi 0, %s31
      %s36 = sphi 0, %s32
      %s37 = sphi 0, %s33
      %s57 = sphi 0, %s59
      %s60 = sphi 0, %s57
      %s61 = sphi 0, %s60
      %s77 = sphi 0, %s61
      %s85 = sphi 0, %s87
      %s88 = sphi 0, %s85
      %s89 = sphi 0, %s88
      %s105 = sphi 0, %s89
      %s111 = sphi 0, %s113
      %s114 = sphi 0, %s111
      %s115 = sphi 0, %s114
      %s131 = sphi 0, %s115
      %s137 = sphi 0, %s139
      %s140 = sphi 0, %s137
      %s141 = sphi 0, %s140
      %s157 = sphi 0, %s141
      %s169 = sphi 0, %s171
      %s172 = sphi 0, %s169
      %s173 = sphi 0, %s172
      %s189 = sphi 0, %s173
    $region4: #{tpu_custom_call.1} parent=1 // loop_header_branch
      %22 = sbr.rel (%p20) target = $region8
    $region5: #{tpu_custom_call.1} parent=1 // loop_body
      %s24 = ssub.s32 %s19, 1
      %s25 = ssub.s32 %s19, 2
      %s38 = sadd.s32 1, %s29
      %p39 = scmp.ge.s32.totalorder %s38, 1
      %s40 = scalar_select %p39, 0, %s38
      %s41 = sadd.s32 1, %s28
      %s42 = scalar_select %p39, %s41, %s28
      %p43 = scmp.ge.s32.totalorder %s42, 1
      %s44 = scalar_select %p43, 0, %s42
      %s45 = sadd.s32 1, %s27
      %s46 = scalar_select %p43, %s45, %s27
      %p47 = scmp.ge.s32.totalorder %s46, 2
      %s48 = scalar_select %p47, 0, %s46
      %s49 = sadd.s32 1, %s26
      %s50 = scalar_select %p47, %s49, %s26
      %p51 = scmp.ge.s32.totalorder %s50, 1
      %s52 = scalar_select %p51, 0, %s50
      %s53 = ssub.s32 %s27, %s48
      %s54 = ssub.s32 %s28, %s44
      %s55 = sor.u32 %s53, %s54
      %p56 = scmp.eq.s32.totalorder %s55, 0
      %s58 = sadd.s32 %s57, 1
      %s59 = scalar_select %p56, %s57, %s58
      %p62 = pneg %p56
      %p63 = scmp.eq.s32.totalorder %s19, 1
      %p64 = por %p62, %p63
      %p65 = scmp.ne.s32.totalorder %s57, %s60
      %p66 = scmp.eq.s32.totalorder %s19, 0
      %p67 = por %p65, %p66
      %p68 = scmp.ne.s32.totalorder %s57, %s60
      %p69 = scmp.eq.s32.totalorder %s24, 1
      %p70 = por %p68, %p69
      %p71 = scmp.ne.s32.totalorder %s60, %s61
      %p72 = scmp.eq.s32.totalorder %s24, 0
      %p73 = por %p71, %p72
      %p74 = scmp.ne.s32.totalorder %s60, %s61
      %p75 = scmp.eq.s32.totalorder %s25, 1
      %p76 = por %p74, %p75
      %p78 = scmp.ne.s32.totalorder %s61, %s77
      %p79 = scmp.eq.s32.totalorder %s25, 0
      %p80 = por %p78, %p79
      %s81 = ssub.s32 %s27, %s48
      %s82 = ssub.s32 %s29, %s40
      %s83 = sor.u32 %s81, %s82
      %p84 = scmp.eq.s32.totalorder %s83, 0
      %s86 = sadd.s32 %s85, 1
      %s87 = scalar_select %p84, %s85, %s86
      %p90 = pneg %p84
      %p91 = scmp.eq.s32.totalorder %s19, 1
      %p92 = por %p90, %p91
      %p93 = scmp.ne.s32.totalorder %s85, %s88
      %p94 = scmp.eq.s32.totalorder %s19, 0
      %p95 = por %p93, %p94
      %p96 = scmp.ne.s32.totalorder %s85, %s88
      %p97 = scmp.eq.s32.totalorder %s24, 1
      %p98 = por %p96, %p97
      %p99 = scmp.ne.s32.totalorder %s88, %s89
      %p100 = scmp.eq.s32.totalorder %s24, 0
      %p101 = por %p99, %p100
      %p102 = scmp.ne.s32.totalorder %s88, %s89
      %p103 = scmp.eq.s32.totalorder %s25, 1
      %p104 = por %p102, %p103
      %p106 = scmp.ne.s32.totalorder %s89, %s105
      %p107 = scmp.eq.s32.totalorder %s25, 0
      %p108 = por %p106, %p107
      %s109 = ssub.s32 %s26, %s52
      %p110 = scmp.eq.s32.totalorder %s109, 0
      %s112 = sadd.s32 %s111, 1
      %s113 = scalar_select %p110, %s111, %s112
      %p116 = pneg %p110
      %p117 = scmp.eq.s32.totalorder %s19, 1
      %p118 = por %p116, %p117
      %p119 = scmp.ne.s32.totalorder %s111, %s114
      %p120 = scmp.eq.s32.totalorder %s19, 0
      %p121 = por %p119, %p120
      %p122 = scmp.ne.s32.totalorder %s111, %s114
      %p123 = scmp.eq.s32.totalorder %s24, 1
      %p124 = por %p122, %p123
      %p125 = scmp.ne.s32.totalorder %s114, %s115
      %p126 = scmp.eq.s32.totalorder %s24, 0
      %p127 = por %p125, %p126
      %p128 = scmp.ne.s32.totalorder %s114, %s115
      %p129 = scmp.eq.s32.totalorder %s25, 1
      %p130 = por %p128, %p129
      %p132 = scmp.ne.s32.totalorder %s115, %s131
      %p133 = scmp.eq.s32.totalorder %s25, 0
      %p134 = por %p132, %p133
      %s135 = ssub.s32 %s26, %s52
      %p136 = scmp.eq.s32.totalorder %s135, 0
      %s138 = sadd.s32 %s137, 1
      %s139 = scalar_select %p136, %s137, %s138
      %p142 = pneg %p136
      %p143 = scmp.eq.s32.totalorder %s19, 1
      %p144 = por %p142, %p143
      %p145 = scmp.ne.s32.totalorder %s137, %s140
      %p146 = scmp.eq.s32.totalorder %s19, 0
      %p147 = por %p145, %p146
      %p148 = scmp.ne.s32.totalorder %s137, %s140
      %p149 = scmp.eq.s32.totalorder %s24, 1
      %p150 = por %p148, %p149
      %p151 = scmp.ne.s32.totalorder %s140, %s141
      %p152 = scmp.eq.s32.totalorder %s24, 0
      %p153 = por %p151, %p152
      %p154 = scmp.ne.s32.totalorder %s140, %s141
      %p155 = scmp.eq.s32.totalorder %s25, 1
      %p156 = por %p154, %p155
      %p158 = scmp.ne.s32.totalorder %s141, %s157
      %p159 = scmp.eq.s32.totalorder %s25, 0
      %p160 = por %p158, %p159
      %s161 = ssub.s32 %s27, %s48
      %s162 = ssub.s32 %s28, %s44
      %s163 = sor.u32 %s161, %s162
      %s164 = ssub.s32 %s29, %s40
      %s165 = sor.u32 %s163, %s164
      %s166 = ssub.s32 %s26, %s52
      %s167 = sor.u32 %s165, %s166
      %p168 = scmp.eq.s32.totalorder %s167, 0
      %s170 = sadd.s32 %s169, 1
      %s171 = scalar_select %p168, %s169, %s170
      %p174 = pneg %p168
      %p175 = scmp.eq.s32.totalorder %s19, 1
      %p176 = por %p174, %p175
      %p177 = scmp.ne.s32.totalorder %s169, %s172
      %p178 = scmp.eq.s32.totalorder %s19, 0
      %p179 = por %p177, %p178
      %p180 = scmp.ne.s32.totalorder %s169, %s172
      %p181 = scmp.eq.s32.totalorder %s24, 1
      %p182 = por %p180, %p181
      %p183 = scmp.ne.s32.totalorder %s172, %s173
      %p184 = scmp.eq.s32.totalorder %s24, 0
      %p185 = por %p183, %p184
      %p186 = scmp.ne.s32.totalorder %s172, %s173
      %p187 = scmp.eq.s32.totalorder %s25, 1
      %p188 = por %p186, %p187
      %p190 = scmp.ne.s32.totalorder %s173, %s189
      %p191 = scmp.eq.s32.totalorder %s25, 0
      %p192 = por %p190, %p191
      %p193 = scmp.le.s32.totalorder 1, %s19
      %p194 = scmp.lt.s32.totalorder %s19, 3
      %p195 = pnand %p193, %p194
      %p196 = pneg %p195
      // Predicated region
      $region9: #{tpu_custom_call.1} parent=5 // pred_check
        _
      $region10: #{tpu_custom_call.1} parent=5 // pred_check_branch
        %198 = sbr.rel (%p195) target = $region12
      $region11: #{tpu_custom_call.1} parent=5 // pred_region
        %s199 = ssub.s32 %s19, 1
        // Predicated region
        $region13: #{tpu_custom_call.1} parent=11 // pred_check
          %p200 = pneg %p127
        $region14: #{tpu_custom_call.1} parent=11 // pred_check_branch
          %202 = sbr.rel (%p200) target = $region16
        $region15: #{tpu_custom_call.1} parent=11 // pred_region
          %s204 = ssub.s32 256, 256
          %205 = vsyncadd [#allocation6], %s204
          %s206 = smul.addr %s30, 64
          %s207 = scalar_lea.hbm %s2, %s206
          %s208 = sshll.u32 [#allocation7], 4
          %s209 = int_to_ptr.vmem [resolvable:$true] %s208
          %214 = dma.hbm_to_vmem [thread:$0]  %s207, 256, %s209, [#allocation6], 64, 64, 4
        $region16: #{tpu_custom_call.1} parent=11 // pred_fallthru
          _
        // Predicated region
        $region17: #{tpu_custom_call.1} parent=11 // pred_check
          %p215 = pneg %p153
        $region18: #{tpu_custom_call.1} parent=11 // pred_check_branch
          %217 = sbr.rel (%p215) target = $region20
        $region19: #{tpu_custom_call.1} parent=11 // pred_region
          %p218 = scmp.lt.s32.totalorder %s30, 0
          %s219 = scalar_select %p218, %s30, 0
          %s220 = scalar_lea.vmem %s3, %s219
        $region20: #{tpu_custom_call.1} parent=11 // pred_fallthru
          _
      $region12: #{tpu_custom_call.1} parent=5 // pred_fallthru
        _
      %p221 = scmp.lt.s32.totalorder %s19, 2
      // Predicated region
      $region21: #{tpu_custom_call.1} parent=5 // pred_check
        %p222 = pneg %p221
      $region22: #{tpu_custom_call.1} parent=5 // pred_check_branch
        %224 = sbr.rel (%p222) target = $region24
      $region23: #{tpu_custom_call.1} parent=5 // pred_region
        // Predicated region
        $region25: #{tpu_custom_call.1} parent=23 // pred_check
          %p225 = pneg %p67
        $region26: #{tpu_custom_call.1} parent=23 // pred_check_branch
          %227 = sbr.rel (%p225) target = $region28
        $region27: #{tpu_custom_call.1} parent=23 // pred_region
          %s228 = sand.u32 %s57, 1
          %s229 = scalar_lea.sflag [#allocation3], %s228
          %s230 = sand.u32 %s57, 1
          %s231 = smul.addr %s230, 8
          %s232 = scalar_lea.vmem [#allocation2], %s231
          %s234 = ssub.s32 128, 128
          %235 = vsyncadd %s229, %s234
          %s236 = sadd.s32 %s28, %s27
          %s237 = smul.addr %s236, 128
          %s238 = scalar_lea.hbm %s0, %s237
          %s240 = sshll.u32 %s232, 4
          %s241 = int_to_ptr.vmem [resolvable:$true] %s240
          %243 = dma.hbm_to_vmem [thread:$0]  %s238, 128, %s241, %s229
        $region28: #{tpu_custom_call.1} parent=23 // pred_fallthru
          _
        // Predicated region
        $region29: #{tpu_custom_call.1} parent=23 // pred_check
          %p244 = pneg %p95
        $region30: #{tpu_custom_call.1} parent=23 // pred_check_branch
          %246 = sbr.rel (%p244) target = $region32
        $region31: #{tpu_custom_call.1} parent=23 // pred_region
          %s247 = sand.u32 %s19, 1
          %s248 = scalar_lea.sflag [#allocation6], %s247
          %s249 = sand.u32 %s85, 1
          %s250 = smul.addr %s249, 8
          %s251 = scalar_lea.vmem [#allocation5], %s250
          %s253 = ssub.s32 128, 128
          %254 = vsyncadd %s248, %s253
          %s255 = sadd.s32 %s29, %s27
          %s256 = smul.addr %s255, 128
          %s257 = scalar_lea.hbm %s1, %s256
          %s259 = sshll.u32 %s251, 4
          %s260 = int_to_ptr.vmem [resolvable:$true] %s259
          %262 = dma.hbm_to_vmem [thread:$0]  %s257, 128, %s260, %s248
        $region32: #{tpu_custom_call.1} parent=23 // pred_fallthru
          _
      $region24: #{tpu_custom_call.1} parent=5 // pred_fallthru
        _
      %p263 = scmp.le.s32.totalorder 1, %s19
      %p264 = scmp.lt.s32.totalorder %s19, 3
      %p265 = pnand %p263, %p264
      %p266 = pneg %p265
      // Predicated region
      $region33: #{tpu_custom_call.1} parent=5 // pred_check
        _
      $region34: #{tpu_custom_call.1} parent=5 // pred_check_branch
        %268 = sbr.rel (%p265) target = $region36
      $region35: #{tpu_custom_call.1} parent=5 // pred_region
        %s269 = ssub.s32 %s19, 1
        %s270 = sand.u32 %s60, 1
        %s271 = scalar_lea.sflag [#allocation3], %s270
        %s272 = sand.u32 %s60, 1
        %s273 = smul.addr %s272, 8
        %s274 = scalar_lea.vmem [#allocation2], %s273
        // Predicated region
        $region37: #{tpu_custom_call.1} parent=35 // pred_check
          %p275 = pneg %p73
        $region38: #{tpu_custom_call.1} parent=35 // pred_check_branch
          %277 = sbr.rel (%p275) target = $region40
        $region39: #{tpu_custom_call.1} parent=35 // pred_region
          %278 = dma.done %s271, 128
        $region40: #{tpu_custom_call.1} parent=35 // pred_fallthru
          _
        %s279 = sand.u32 %s24, 1
        %s280 = scalar_lea.sflag [#allocation6], %s279
        %s281 = sand.u32 %s88, 1
        %s282 = smul.addr %s281, 8
        %s283 = scalar_lea.vmem [#allocation5], %s282
        // Predicated region
        $region41: #{tpu_custom_call.1} parent=35 // pred_check
          %p284 = pneg %p101
        $region42: #{tpu_custom_call.1} parent=35 // pred_check_branch
          %286 = sbr.rel (%p284) target = $region44
        $region43: #{tpu_custom_call.1} parent=35 // pred_region
          %287 = dma.done %s280, 128
        $region44: #{tpu_custom_call.1} parent=35 // pred_fallthru
          _
        // Predicated region
        $region45: #{tpu_custom_call.1} parent=35 // pred_check
          %p288 = pneg %p127
        $region46: #{tpu_custom_call.1} parent=35 // pred_check_branch
          %290 = sbr.rel (%p288) target = $region48
        $region47: #{tpu_custom_call.1} parent=35 // pred_region
          %291 = dma.done [#allocation6], 256
        $region48: #{tpu_custom_call.1} parent=35 // pred_fallthru
          _
        %s292 = sand.u32 %s60, 1
        %s293 = scalar_lea.sflag [#allocation3], %s292
        %s294 = sand.u32 %s60, 1
        %s295 = smul.addr %s294, 8
        %s296 = scalar_lea.vmem [#allocation2], %s295
        %p297 = pneg %p73
        %p298 = pneg %p70
        %s299 = sand.u32 %s24, 1
        %s300 = scalar_lea.sflag [#allocation6], %s299
        %s301 = sand.u32 %s88, 1
        %s302 = smul.addr %s301, 8
        %s303 = scalar_lea.vmem [#allocation5], %s302
        %p304 = pneg %p101
        %p305 = pneg %p98
        %p306 = pneg %p127
        %p307 = pneg %p124
        %p308 = scmp.lt.s32.totalorder %s30, 0
        %s309 = scalar_select %p308, %s30, 0
        %s310 = scalar_lea.vmem %s3, %s309
        %p311 = pneg %p153
        %p312 = pneg %p150
        %p313 = pneg %p185
        %p314 = pneg %p182
        %s315 = sand.u32 %s172, 1
        %s316 = scalar_lea.sflag [#allocation4], %s315
        %s317 = sand.u32 %s172, 1
        %s318 = smul.addr %s317, 64
        %s319 = scalar_lea.vmem [#allocation8], %s318
        %p320 = scmp.lt.s32.totalorder %s30, 0
        %s321 = scalar_select %p320, %s30, 0
        %s322 = scalar_lea.vmem %s3, %s321
        %s323 = smul.u32 8, %s32
        %v325 = vld [vmem:[%s274] sm:$0xff]
        %v326 = vld [vmem:[%s283] sm:$0xff]
        %v328 = vcombine.high %v325, %v325
        %v330 = vunpack.c.l.s4 1966171168
        %v331 = vunpack.c.0.s8 %v330
        %v332 = vlaneseq
        %v333 = vshrl.u32 %v332, 7
        %v334 = vsub.s32 %v331, %v333
        %v335 = vrot.slane %v325, %v334
        %v337 = vunpack.c.l.s4 1966171168
        %v338 = vunpack.c.0.s8 %v337
        %v339 = vlaneseq
        %v340 = vshrl.u32 %v339, 7
        %v341 = vsub.s32 %v338, %v340
        %v342 = vrot.slane %v328, %v341
        %v343 = vcombine.high %v335, %v335
        %v344 = vcombine.high %v342, %v342
        %v346 = vunpack.c.l.s4 1966171168
        %v347 = vunpack.c.0.s8 %v346
        %v348 = vlaneseq
        %v349 = vshrl.u32 %v348, 7
        %v350 = vsub.s32 %v347, %v349
        %v351 = vrot.slane %v335, %v350
        %v353 = vunpack.c.l.s4 1966171168
        %v354 = vunpack.c.0.s8 %v353
        %v355 = vlaneseq
        %v356 = vshrl.u32 %v355, 7
        %v357 = vsub.s32 %v354, %v356
        %v358 = vrot.slane %v342, %v357
        %v360 = vunpack.c.l.s4 1966171168
        %v361 = vunpack.c.0.s8 %v360
        %v362 = vlaneseq
        %v363 = vshrl.u32 %v362, 7
        %v364 = vsub.s32 %v361, %v363
        %v365 = vrot.slane %v343, %v364
        %v367 = vunpack.c.l.s4 1966171168
        %v368 = vunpack.c.0.s8 %v367
        %v369 = vlaneseq
        %v370 = vshrl.u32 %v369, 7
        %v371 = vsub.s32 %v368, %v370
        %v372 = vrot.slane %v344, %v371
        %v373 = vcombine.high %v351, %v351
        %v374 = vcombine.high %v358, %v358
        %v375 = vcombine.high %v365, %v365
        %v376 = vcombine.high %v372, %v372
        %v377 = vlaneseq
        %v378 = vshrl.u32 %v377, 7
        %v379 = vsub.s32 0, %v378
        %v380 = vrot.slane %v351, %v379
        %v381 = vlaneseq
        %v382 = vshrl.u32 %v381, 7
        %v383 = vsub.s32 0, %v382
        %v384 = vrot.slane %v365, %v383
        %v385 = vlaneseq
        %v386 = vshrl.u32 %v385, 7
        %v387 = vsub.s32 0, %v386
        %v388 = vrot.slane %v373, %v387
        %v389 = vlaneseq
        %v390 = vshrl.u32 %v389, 7
        %v391 = vsub.s32 0, %v390
        %v392 = vrot.slane %v375, %v391
        %v393 = vlaneseq
        %v394 = vshrl.u32 %v393, 7
        %v395 = vsub.s32 0, %v394
        %v396 = vrot.slane %v358, %v395
        %v397 = vlaneseq
        %v398 = vshrl.u32 %v397, 7
        %v399 = vsub.s32 0, %v398
        %v400 = vrot.slane %v372, %v399
        %v401 = vlaneseq
        %v402 = vshrl.u32 %v401, 7
        %v403 = vsub.s32 0, %v402
        %v404 = vrot.slane %v374, %v403
        %v405 = vlaneseq
        %v406 = vshrl.u32 %v405, 7
        %v407 = vsub.s32 0, %v406
        %v408 = vrot.slane %v376, %v407
        %v417 = vmul.f32 %v380, %v326
        %v418 = vmul.f32 %v384, %v326
        %v419 = vmul.f32 %v388, %v326
        %v420 = vmul.f32 %v392, %v326
        %v421 = vmul.f32 %v396, %v326
        %v422 = vmul.f32 %v400, %v326
        %v423 = vmul.f32 %v404, %v326
        %v424 = vmul.f32 %v408, %v326
        %v425 = vpack.c.bf16 %v417, %v417
        %v426 = vpack.c.bf16 %v418, %v418
        %v427 = vpack.c.bf16 %v419, %v419
        %v428 = vpack.c.bf16 %v420, %v420
        %v429 = vpack.c.bf16 %v421, %v421
        %v430 = vpack.c.bf16 %v422, %v422
        %v431 = vpack.c.bf16 %v423, %v423
        %v432 = vpack.c.bf16 %v424, %v424
        %v433 = vld [vmem:[#allocation7] sm:$0xf]
        %v434 = vld [vmem:[#allocation7 + $0x4] sm:$0xf]
        %v435 = vld [vmem:[#allocation7 + $0x8] sm:$0xf]
        %v436 = vld [vmem:[#allocation7 + $0xc] sm:$0xf]
        %v437 = vld [vmem:[%s322] sm:$0x1]
        %v439 = vlaneseq
        %v440 = vshrl.u32 %v439, 7
        %v441 = vsub.s32 0, %v440
        %v442 = vrot.slane %v437, %v441
        %v452 = vunpack.c.l.b16 %v425
        %v453 = vunpack.c.l.b16 %v426
        %v454 = vunpack.c.l.b16 %v427
        %v455 = vunpack.c.l.b16 %v428
        %v456 = vunpack.c.l.b16 %v429
        %v457 = vunpack.c.l.b16 %v430
        %v458 = vunpack.c.l.b16 %v431
        %v459 = vunpack.c.l.b16 %v432
        %v460 = vpack.c.b16 %v453, %v452
        %v461 = vpack.c.b16 %v455, %v454
        %v462 = vpack.c.b16 %v457, %v456
        %v463 = vpack.c.b16 %v459, %v458
        %v468 = vunpack.c.l.b16 %v433
        %v469 = vunpack.c.l.b16 %v434
        %v470 = vunpack.c.l.b16 %v435
        %v471 = vunpack.c.l.b16 %v436
        %v472 = vpack.c.b16 %v469, %v468
        %v473 = vpack.c.b16 %v471, %v470
        %vm476 = vcmask 261120
        %v478 = vsel %vm476, %v460, 0
        %v481 = vsel %vm476, %v461, 0
        %v484 = vsel %vm476, %v462, 0
        %v487 = vsel %vm476, %v463, 0
        %489 = vmatprep.subr.bf16.mxu0 0
        %490 = vmatpush1.bf16.msra.mxu0 %v472
        %491 = vmatprep.subr.bf16.mxu0 0
        %492 = vmatpush1.bf16.msra.mxu0 %v473
        %493 = vmatprep.subr.bf16.mxu0 0
        %494 = vmatpush1.bf16.msra.mxu0 0
        %495 = vmatprep.subr.bf16.mxu0 0
        %496 = vmatpush1.bf16.msra.mxu0 0
        %497 = vmatprep.subr.bf16.mxu0 0
        %498 = vmatpush1.bf16.msra.mxu0 0
        %499 = vmatprep.subr.bf16.mxu0 0
        %500 = vmatpush1.bf16.msra.mxu0 0
        %501 = vmatprep.subr.bf16.mxu0 0
        %502 = vmatpush1.bf16.msra.mxu0 0
        %503 = vmatprep.subr.bf16.mxu0 0
        %504 = vmatpush1.bf16.msra.mxu0 0
        %505 = vmatprep.subr.bf16.mxu0 0
        %506 = vmatpush1.bf16.msra.mxu0 0
        %507 = vmatprep.subr.bf16.mxu0 0
        %508 = vmatpush1.bf16.msra.mxu0 0
        %509 = vmatprep.subr.bf16.mxu0 0
        %510 = vmatpush1.bf16.msra.mxu0 0
        %511 = vmatprep.subr.bf16.mxu0 0
        %512 = vmatpush1.bf16.msra.mxu0 0
        %513 = vmatprep.subr.bf16.mxu0 0
        %514 = vmatpush1.bf16.msra.mxu0 0
        %515 = vmatprep.subr.bf16.mxu0 0
        %516 = vmatpush1.bf16.msra.mxu0 0
        %517 = vmatprep.subr.bf16.mxu0 0
        %518 = vmatpush1.bf16.msra.mxu0 0
        %519 = vmatprep.subr.bf16.mxu0 0
        %520 = vmatpush1.bf16.msra.mxu0 0
        %521 = vmatprep.mubr.bf16.mxu0 0
        %522 = vmatmul.mubr.bf16.gmra.mrb[0].mxu0 %v478
        %v523 = vpop.f32.mrb[0].mxu0
        %v524 = vadd.f32 %v442, %v523
        %v525 = vpop.f32.mrb[0].mxu0
        %v526 = vpop.f32.mrb[0].mxu0
        %v527 = vadd.f32 %v442, %v526
        %v528 = vpop.f32.mrb[0].mxu0
        %529 = vmatprep.mubr.bf16.mxu0 0
        %530 = vmatmul.mubr.bf16.gmra.mrb[0].mxu0 %v481
        %v531 = vpop.f32.mrb[0].mxu0
        %v532 = vadd.f32 %v442, %v531
        %v533 = vpop.f32.mrb[0].mxu0
        %v534 = vpop.f32.mrb[0].mxu0
        %v535 = vadd.f32 %v442, %v534
        %v536 = vpop.f32.mrb[0].mxu0
        %537 = vmatprep.mubr.bf16.mxu0 0
        %538 = vmatmul.mubr.bf16.gmra.mrb[0].mxu0 %v484
        %v539 = vpop.f32.mrb[0].mxu0
        %v540 = vadd.f32 %v442, %v539
        %v541 = vpop.f32.mrb[0].mxu0
        %v542 = vpop.f32.mrb[0].mxu0
        %v543 = vadd.f32 %v442, %v542
        %v544 = vpop.f32.mrb[0].mxu0
        %545 = vmatprep.mubr.bf16.mxu0 0
        %546 = vmatmul.mubr.bf16.gmra.mrb[0].mxu0 %v487
        %v547 = vpop.f32.mrb[0].mxu0
        %v548 = vadd.f32 %v442, %v547
        %v549 = vpop.f32.mrb[0].mxu0
        %v550 = vpop.f32.mrb[0].mxu0
        %v551 = vadd.f32 %v442, %v550
        %v552 = vpop.f32.mrb[0].mxu0
        %553 = vdwg.mxu0
        %554 = vst [vmem:[%s319] sm:$0xff] %v524
        %555 = vst [vmem:[%s319 + $0x8] sm:$0xff] %v527
        %556 = vst [vmem:[%s319 + $0x10] sm:$0xff] %v532
        %557 = vst [vmem:[%s319 + $0x18] sm:$0xff] %v535
        %558 = vst [vmem:[%s319 + $0x20] sm:$0xff] %v540
        %559 = vst [vmem:[%s319 + $0x28] sm:$0xff] %v543
        %560 = vst [vmem:[%s319 + $0x30] sm:$0xff] %v548
        %561 = vst [vmem:[%s319 + $0x38] sm:$0xff] %v551
        %s562 = sand.u32 %s172, 1
        %s563 = scalar_lea.sflag [#allocation4], %s562
        %s564 = sand.u32 %s172, 1
        %s565 = smul.addr %s564, 64
        %s566 = scalar_lea.vmem [#allocation8], %s565
        // Predicated region
        $region49: #{tpu_custom_call.1} parent=35 // pred_check
          %p567 = pneg %p182
        $region50: #{tpu_custom_call.1} parent=35 // pred_check_branch
          %569 = sbr.rel (%p567) target = $region52
        $region51: #{tpu_custom_call.1} parent=35 // pred_region
          %s570 = smul.u32 8, %s32
          %s572 = ssub.s32 1024, 1024
          %573 = vsyncadd %s563, %s572
          %s574 = sadd.s32 %s30, %s33
          %s575 = sadd.s32 %s574, %s570
          %s576 = smul.addr %s31, 8
          %s577 = sadd.s32 %s575, %s576
          %s578 = smul.addr %s577, 128
          %s579 = scalar_lea.hbm %s4, %s578
          %s580 = sshll.u32 %s566, 4
          %s581 = int_to_ptr.vmem [resolvable:$true] %s580
          %586 = dma.vmem_to_hbm [thread:$0]  %s581, 1024, %s579, %s563, 128, 128, 8
        $region52: #{tpu_custom_call.1} parent=35 // pred_fallthru
          _
      $region36: #{tpu_custom_call.1} parent=5 // pred_fallthru
        _
      %p587 = scmp.le.s32.totalorder 2, %s19
      // Predicated region
      $region53: #{tpu_custom_call.1} parent=5 // pred_check
        %p588 = pneg %p587
      $region54: #{tpu_custom_call.1} parent=5 // pred_check_branch
        %590 = sbr.rel (%p588) target = $region56
      $region55: #{tpu_custom_call.1} parent=5 // pred_region
        %s591 = ssub.s32 %s19, 2
        // Predicated region
        $region57: #{tpu_custom_call.1} parent=55 // pred_check
          %p592 = pneg %p188
        $region58: #{tpu_custom_call.1} parent=55 // pred_check_branch
          %594 = sbr.rel (%p592) target = $region60
        $region59: #{tpu_custom_call.1} parent=55 // pred_region
          %s595 = sand.u32 %s173, 1
          %s596 = scalar_lea.sflag [#allocation4], %s595
          %s597 = sand.u32 %s173, 1
          %s598 = smul.addr %s597, 64
          %s599 = scalar_lea.vmem [#allocation8], %s598
          %600 = dma.done %s596, 1024
        $region60: #{tpu_custom_call.1} parent=55 // pred_fallthru
          _
      $region56: #{tpu_custom_call.1} parent=5 // pred_fallthru
        _
    $region6: #{tpu_custom_call.1} parent=1 // loop_footer
      %s23 = sadd.s32 1, %s19
    $region7: #{tpu_custom_call.1} parent=1 // loop_footer_branch
      %18 = sbr.rel target = $region3
    $region8: #{tpu_custom_call.1} parent=1 // loop_exit
      _
    %601 = vsyncpa [#allocation3], 1
    %s602 = scalar_lea.sflag [#allocation3], 1
    %603 = vsyncpa %s602, 1
    %604 = vsyncpa [#allocation6], 1
    %s605 = scalar_lea.sflag [#allocation6], 1
    %606 = vsyncpa %s605, 1
    %607 = vsyncpa [#allocation4], 1
    %s608 = scalar_lea.sflag [#allocation4], 1
    %609 = vsyncpa %s608, 1

</llo_original>
